<compile_context>
chip_gen: v5e
topology: v5e:2x2
jax: 0.10.0
libtpu: 0.0.40
codegen_flags: <defaults>
</compile_context>

<pallas_src>
import math
from functools import partial

import jax
import jax.numpy as jnp
import numpy as np
from jax import lax
from jax.experimental import pallas as pl
from jax.experimental.pallas import tpu as pltpu

DOTS_LENGTH = 11
EMB_LENGTH = 11
MAX_SVG_LENGTH = 250
ATTN_PAD = 256  # MAX_SVG_LENGTH padded up to a lane-dense multiple of 128


# ----------------------------------------------------------------------------
# Pallas kernel: whole autoregressive decode (grid axis = time step).
# ----------------------------------------------------------------------------
def attn_decoder_kernel(
    x0_ref, h0_ref, enc_ref,
    wa_x_ref, wa_h_ref, ba_ref,
    wc_x_ref, wc_a_ref, bc_ref,
    wih_ref, whh_ref, bih_ref, bhh_ref,
    wo_ref, bo_ref,
    out_ref, hid_ref, attn_ref,
    x_sc, h_sc,
):
    f32 = jnp.float32
    D = DOTS_LENGTH
    t = pl.program_id(0)

    # Initialize the carried state on the first step.
    @pl.when(t == 0)
    def _():
        x_sc[...] = x0_ref[...]
        h_sc[...] = h0_ref[...]

    x = x_sc[...]          # (1, 11)  == input.unsqueeze(0)
    h = h_sc[...]          # (1, 11)  == hidden[0]

    # attn_weights = tanh(Linear_{22->250}(cat(x, h)))  (padded to 256 lanes,
    # padded columns have zero weight+bias -> tanh(0) = 0).
    attn_pre = (jnp.dot(x, wa_x_ref[...], preferred_element_type=f32)
                + jnp.dot(h, wa_h_ref[...], preferred_element_type=f32)
                + ba_ref[...])
    attn_w = jnp.tanh(attn_pre)                        # (1, 256)
    attn_ref[pl.ds(t, 1), :] = attn_w

    # attn_applied = bmm(attn_w, encoder_outputs)       -> (1, 11)
    # (encoder rows 250..255 are zero, so the padding contributes nothing.)
    attn_applied = jnp.dot(attn_w, enc_ref[...], preferred_element_type=f32)

    # output = relu(Linear_{22->11}(cat(x, attn_applied)))
    comb = (jnp.dot(x, wc_x_ref[...], preferred_element_type=f32)
            + jnp.dot(attn_applied, wc_a_ref[...], preferred_element_type=f32)
            + bc_ref[...])
    g = jnp.maximum(comb, 0.0)                         # (1, 11) GRU input

    # One GRU step, gates fused: two (1,11)@(11,33) dots, static lane slices.
    gi = jnp.dot(g, wih_ref[...], preferred_element_type=f32) + bih_ref[...]  # (1, 33)
    gh = jnp.dot(h, whh_ref[...], preferred_element_type=f32) + bhh_ref[...]  # (1, 33)
    r = jax.nn.sigmoid(gi[:, 0:D] + gh[:, 0:D])
    z = jax.nn.sigmoid(gi[:, D:2 * D] + gh[:, D:2 * D])
    n = jnp.tanh(gi[:, 2 * D:3 * D] + r * gh[:, 2 * D:3 * D])
    h_new = (1.0 - z) * n + z * h                      # (1, 11)

    # output = tanh(Linear_{11->11}(gru_output))
    out = jnp.tanh(
        jnp.dot(h_new, wo_ref[...], preferred_element_type=f32) + bo_ref[...])

    out_ref[pl.ds(t, 1), :] = out
    hid_ref[pl.ds(t, 1), :] = h_new

    # Carry state to the next grid step.
    # TODO(synk): the fused multi-step decode assumes the standard
    # autoregressive rule next_input = previous_output; the PyTorch module
    # itself only specifies the single-step forward (num_steps=1 is exact).
    h_sc[...] = h_new
    x_sc[...] = out


# ----------------------------------------------------------------------------
# One-time parameter preparation (all transposes / splits / padding hoisted).
# ----------------------------------------------------------------------------
def prepare_params(params):
    D, A = DOTS_LENGTH, ATTN_PAD

    # attn: Linear(22 -> 250), transposed and lane-padded to 256.
    wa_t = params["attn_w"].T.astype(jnp.float32)                 # (22, 250)
    wa_pad = jnp.zeros((2 * D, A), jnp.float32).at[:, :MAX_SVG_LENGTH].set(wa_t)
    wa_x, wa_h = wa_pad[:D], wa_pad[D:]                           # (11, 256) each
    ba = jnp.zeros((1, A), jnp.float32).at[0, :MAX_SVG_LENGTH].set(params["attn_b"])

    # attn_combine: Linear(22 -> 11), split by cat(input, attn_applied).
    wc_t = params["combine_w"].T.astype(jnp.float32)              # (22, 11)
    wc_x, wc_a = wc_t[:D], wc_t[D:]                               # (11, 11) each
    bc = params["combine_b"][None, :].astype(jnp.float32)         # (1, 11)

    # GRU: keep all three gates fused, pre-transposed to (11, 33).
    wih = params["gru_wih"].T.astype(jnp.float32)                 # (11, 33)
    whh = params["gru_whh"].T.astype(jnp.float32)                 # (11, 33)
    bih = params["gru_bih"][None, :].astype(jnp.float32)          # (1, 33)
    bhh = params["gru_bhh"][None, :].astype(jnp.float32)          # (1, 33)

    wo = params["out_w"].T.astype(jnp.float32)                    # (11, 11)
    bo = params["out_b"][None, :].astype(jnp.float32)             # (1, 11)

    return dict(wa_x=wa_x, wa_h=wa_h, ba=ba,
                wc_x=wc_x, wc_a=wc_a, bc=bc,
                wih=wih, whh=whh, bih=bih, bhh=bhh,
                wo=wo, bo=bo)


# ----------------------------------------------------------------------------
# Wrappers.
# ----------------------------------------------------------------------------
@partial(jax.jit, static_argnames=("num_steps",))
def attn_decoder_decode(prep, inp, hidden, encoder_outputs, num_steps):
    """Run `num_steps` fused decode steps in a single pallas_call.

    inp: (1, 11); hidden: (1, 1, 11); encoder_outputs: (250, 11).
    Returns per-step (outputs (T,11), hiddens (T,11), attn_weights (T,250)).
    """
    D, A, T = DOTS_LENGTH, ATTN_PAD, num_steps
    h0 = hidden[0]                                                # (1, 11)
    enc_pad = jnp.zeros((A, D), jnp.float32).at[:MAX_SVG_LENGTH, :].set(
        encoder_outputs.astype(jnp.float32))

    const2d = lambda t: (0, 0)
    vspec = lambda shape: pl.BlockSpec(shape, const2d)            # resident block

    in_specs = [
        vspec((1, D)), vspec((1, D)), vspec((A, D)),
        vspec((D, A)), vspec((D, A)), vspec((1, A)),
        vspec((D, D)), vspec((D, D)), vspec((1, D)),
        vspec((D, 3 * D)), vspec((D, 3 * D)), vspec((1, 3 * D)), vspec((1, 3 * D)),
        vspec((D, D)), vspec((1, D)),
    ]
    out_specs = (vspec((T, D)), vspec((T, D)), vspec((T, A)))

    outs, hids, attns = pl.pallas_call(
        attn_decoder_kernel,
        out_shape=(
            jax.ShapeDtypeStruct((T, D), jnp.float32),            # outputs
            jax.ShapeDtypeStruct((T, D), jnp.float32),            # hiddens
            jax.ShapeDtypeStruct((T, A), jnp.float32),            # attn weights (padded)
        ),
        grid_spec=pltpu.PrefetchScalarGridSpec(
            num_scalar_prefetch=0,
            grid=(T,),
            in_specs=in_specs,
            out_specs=out_specs,
            scratch_shapes=[pltpu.VMEM((1, D), jnp.float32),      # carried input
                            pltpu.VMEM((1, D), jnp.float32)],     # carried hidden
        ),
        compiler_params=pltpu.CompilerParams(
            dimension_semantics=("arbitrary",)),                  # loop-carried state
    )(inp, h0, enc_pad,
      prep["wa_x"], prep["wa_h"], prep["ba"],
      prep["wc_x"], prep["wc_a"], prep["bc"],
      prep["wih"], prep["whh"], prep["bih"], prep["bhh"],
      prep["wo"], prep["bo"])

    return outs, hids, attns[:, :MAX_SVG_LENGTH]


def attn_decoder_forward(prep, inp, hidden, encoder_outputs):
    """Exact single-step forward of the PyTorch module (via the fused kernel)."""
    outs, hids, attns = attn_decoder_decode(prep, inp, hidden, encoder_outputs,
                                            num_steps=1)
    return outs, hids[None, :, :], attns   # (1,11), (1,1,11), (1,250)


# ----------------------------------------------------------------------------
# Deterministic parameter init (PyTorch-style uniform bounds, synthetic).
# ----------------------------------------------------------------------------
def _linear_init(key, out_f, in_f):
    k1, k2 = jax.random.split(key)
    bound = 1.0 / math.sqrt(in_f)
    w = jax.random.uniform(k1, (out_f, in_f), jnp.float32, -bound, bound)
    b = jax.random.uniform(k2, (out_f,), jnp.float32, -bound, bound)
    return w, b


def init_params(key):
    D = DOTS_LENGTH
    keys = jax.random.split(key, 8)
    attn_w, attn_b = _linear_init(keys[0], MAX_SVG_LENGTH, 2 * D)
    combine_w, combine_b = _linear_init(keys[1], D, EMB_LENGTH + D)
    out_w, out_b = _linear_init(keys[2], D, D)
    bound = 1.0 / math.sqrt(D)
    gru_wih = jax.random.uniform(keys[3], (3 * D, D), jnp.float32, -bound, bound)
    gru_whh = jax.random.uniform(keys[4], (3 * D, D), jnp.float32, -bound, bound)
    gru_bih = jax.random.uniform(keys[5], (3 * D,), jnp.float32, -bound, bound)
    gru_bhh = jax.random.uniform(keys[6], (3 * D,), jnp.float32, -bound, bound)
    return dict(attn_w=attn_w, attn_b=attn_b,
                combine_w=combine_w, combine_b=combine_b,
                gru_wih=gru_wih, gru_whh=gru_whh,
                gru_bih=gru_bih, gru_bhh=gru_bhh,
                out_w=out_w, out_b=out_b)


# ----------------------------------------------------------------------------
# Pure-JAX references mirroring the PyTorch forward.
# ----------------------------------------------------------------------------
def reference_forward(params, inp, hidden, encoder_outputs):
    D = DOTS_LENGTH
    h0 = hidden[0]
    cat = jnp.concatenate([inp, h0], axis=1)                          # (1, 22)
    attn_w = jnp.tanh(cat @ params["attn_w"].T + params["attn_b"])    # (1, 250)
    attn_applied = attn_w @ encoder_outputs                           # (1, 11)
    cat2 = jnp.concatenate([inp, attn_applied], axis=1)               # (1, 22)
    g = jnp.maximum(cat2 @ params["combine_w"].T + params["combine_b"], 0.0)
    gi = g @ params["gru_wih"].T + params["gru_bih"]
    gh = h0 @ params["gru_whh"].T + params["gru_bhh"]
    r = jax.nn.sigmoid(gi[:, 0:D] + gh[:, 0:D])
    z = jax.nn.sigmoid(gi[:, D:2 * D] + gh[:, D:2 * D])
    n = jnp.tanh(gi[:, 2 * D:] + r * gh[:, 2 * D:])
    h_new = (1.0 - z) * n + z * h0
    out = jnp.tanh(h_new @ params["out_w"].T + params["out_b"])
    return out, h_new[None, :, :], attn_w


def reference_decode(params, inp, hidden, encoder_outputs, num_steps):
    def step(carry, _):
        x, h = carry
        out, h_new, attn_w = reference_forward(params, x, h, encoder_outputs)
        return (out, h_new), (out[0], h_new[0, 0], attn_w[0])
    _, (outs, hids, attns) = lax.scan(step, (inp, hidden), xs=None, length=num_steps)
    return outs, hids, attns


if __name__ == "__main__":
    key = jax.random.PRNGKey(0)
    kp, ki, kh, ke = jax.random.split(key, 4)
    params = init_params(kp)
    prep = prepare_params(params)          # one-time layout work (hoisted)

    inp = jax.random.normal(ki, (1, DOTS_LENGTH), jnp.float32)
    hidden = jax.random.normal(kh, (1, 1, DOTS_LENGTH), jnp.float32)
    encoder_outputs = jax.random.normal(ke, (MAX_SVG_LENGTH, DOTS_LENGTH), jnp.float32)

    # 1) Single-step forward == module semantics.
    out, h_new, attn_w = jax.block_until_ready(
        attn_decoder_forward(prep, inp, hidden, encoder_outputs))
    ref_out, ref_h, ref_aw = reference_forward(params, inp, hidden, encoder_outputs)
    np.testing.assert_allclose(np.asarray(out), np.asarray(ref_out), rtol=1e-5, atol=1e-5)
    np.testing.assert_allclose(np.asarray(h_new), np.asarray(ref_h), rtol=1e-5, atol=1e-5)
    np.testing.assert_allclose(np.asarray(attn_w), np.asarray(ref_aw), rtol=1e-5, atol=1e-5)
    assert out.shape == (1, DOTS_LENGTH)
    assert h_new.shape == (1, 1, DOTS_LENGTH)
    assert attn_w.shape == (1, MAX_SVG_LENGTH)

    # 2) Fused multi-step decode (loop inside one pallas_call), small T demo.
    T = 8
    outs, hids, attns = jax.block_until_ready(
        attn_decoder_decode(prep, inp, hidden, encoder_outputs, num_steps=T))
    ref_outs, ref_hids, ref_attns = reference_decode(params, inp, hidden,
                                                     encoder_outputs, T)
    np.testing.assert_allclose(np.asarray(outs), np.asarray(ref_outs), rtol=1e-4, atol=1e-4)
    np.testing.assert_allclose(np.asarray(hids), np.asarray(ref_hids), rtol=1e-4, atol=1e-4)
    np.testing.assert_allclose(np.asarray(attns), np.asarray(ref_attns), rtol=1e-4, atol=1e-4)
    assert outs.shape == (T, DOTS_LENGTH)
    assert hids.shape == (T, DOTS_LENGTH)
    assert attns.shape == (T, MAX_SVG_LENGTH)

    print("KERNEL_OK")
</pallas_src>

<mosaic_0001>
module attributes {stable_mosaic.version = 11 : i64} {
  func.func @attn_decoder_kernel(%arg0: i32, %arg1: memref<1x11xf32, #tpu.memory_space<vmem>>, %arg2: memref<1x11xf32, #tpu.memory_space<vmem>>, %arg3: memref<256x11xf32, #tpu.memory_space<vmem>>, %arg4: memref<11x256xf32, #tpu.memory_space<vmem>>, %arg5: memref<11x256xf32, #tpu.memory_space<vmem>>, %arg6: memref<1x256xf32, #tpu.memory_space<vmem>>, %arg7: memref<11x11xf32, #tpu.memory_space<vmem>>, %arg8: memref<11x11xf32, #tpu.memory_space<vmem>>, %arg9: memref<1x11xf32, #tpu.memory_space<vmem>>, %arg10: memref<11x33xf32, #tpu.memory_space<vmem>>, %arg11: memref<11x33xf32, #tpu.memory_space<vmem>>, %arg12: memref<1x33xf32, #tpu.memory_space<vmem>>, %arg13: memref<1x33xf32, #tpu.memory_space<vmem>>, %arg14: memref<11x11xf32, #tpu.memory_space<vmem>>, %arg15: memref<1x11xf32, #tpu.memory_space<vmem>>, %arg16: memref<1x11xf32, #tpu.memory_space<vmem>>, %arg17: memref<1x11xf32, #tpu.memory_space<vmem>>, %arg18: memref<1x256xf32, #tpu.memory_space<vmem>>, %arg19: memref<1x11xf32, #tpu.memory_space<vmem>>, %arg20: memref<1x11xf32, #tpu.memory_space<vmem>>) attributes {dimension_semantics = [#tpu.dimension_semantics<arbitrary>], iteration_bounds = array<i64: 1>, scalar_prefetch = 0 : i64, scratch_operands = 2 : i64, tpu.core_type = #tpu.core_type<tc>, window_params = [{pipeline_mode = #tpu.pipeline_mode<synchronous>, transform_indices = @transform_0, window_bounds = array<i64: 1, 11>}, {pipeline_mode = #tpu.pipeline_mode<synchronous>, transform_indices = @transform_1, window_bounds = array<i64: 1, 11>}, {pipeline_mode = #tpu.pipeline_mode<synchronous>, transform_indices = @transform_2, window_bounds = array<i64: 256, 11>}, {pipeline_mode = #tpu.pipeline_mode<synchronous>, transform_indices = @transform_3, window_bounds = array<i64: 11, 256>}, {pipeline_mode = #tpu.pipeline_mode<synchronous>, transform_indices = @transform_4, window_bounds = array<i64: 11, 256>}, {pipeline_mode = #tpu.pipeline_mode<synchronous>, transform_indices = @transform_5, window_bounds = array<i64: 1, 256>}, {pipeline_mode = #tpu.pipeline_mode<synchronous>, transform_indices = @transform_6, window_bounds = array<i64: 11, 11>}, {pipeline_mode = #tpu.pipeline_mode<synchronous>, transform_indices = @transform_7, window_bounds = array<i64: 11, 11>}, {pipeline_mode = #tpu.pipeline_mode<synchronous>, transform_indices = @transform_8, window_bounds = array<i64: 1, 11>}, {pipeline_mode = #tpu.pipeline_mode<synchronous>, transform_indices = @transform_9, window_bounds = array<i64: 11, 33>}, {pipeline_mode = #tpu.pipeline_mode<synchronous>, transform_indices = @transform_10, window_bounds = array<i64: 11, 33>}, {pipeline_mode = #tpu.pipeline_mode<synchronous>, transform_indices = @transform_11, window_bounds = array<i64: 1, 33>}, {pipeline_mode = #tpu.pipeline_mode<synchronous>, transform_indices = @transform_12, window_bounds = array<i64: 1, 33>}, {pipeline_mode = #tpu.pipeline_mode<synchronous>, transform_indices = @transform_13, window_bounds = array<i64: 11, 11>}, {pipeline_mode = #tpu.pipeline_mode<synchronous>, transform_indices = @transform_14, window_bounds = array<i64: 1, 11>}, {pipeline_mode = #tpu.pipeline_mode<synchronous>, transform_indices = @transform_15, window_bounds = array<i64: 1, 11>}, {pipeline_mode = #tpu.pipeline_mode<synchronous>, transform_indices = @transform_16, window_bounds = array<i64: 1, 11>}, {pipeline_mode = #tpu.pipeline_mode<synchronous>, transform_indices = @transform_17, window_bounds = array<i64: 1, 256>}]} {
    %c0_i32 = arith.constant 0 : i32
    %0 = arith.cmpi eq, %arg0, %c0_i32 : i32
    %1 = arith.extui %0 : i1 to i32
    %c0_i32_0 = arith.constant 0 : i32
    %2 = arith.cmpi ne, %1, %c0_i32_0 : i32
    scf.if %2 {
      %c0_48 = arith.constant 0 : index
      %c0_49 = arith.constant 0 : index
      %71 = vector.load %arg1[%c0_48, %c0_49] : memref<1x11xf32, #tpu.memory_space<vmem>>, vector<1x11xf32>
      %c0_50 = arith.constant 0 : index
      %c0_51 = arith.constant 0 : index
      %72 = vector.load %arg19[%c0_50, %c0_51] : memref<1x11xf32, #tpu.memory_space<vmem>>, vector<1x11xf32>
      tpu.vector_store %arg19[%c0_50, %c0_51], %71 {strides = array<i32>} : memref<1x11xf32, #tpu.memory_space<vmem>>, vector<1x11xf32>,
      %c0_52 = arith.constant 0 : index
      %c0_53 = arith.constant 0 : index
      %73 = vector.load %arg2[%c0_52, %c0_53] : memref<1x11xf32, #tpu.memory_space<vmem>>, vector<1x11xf32>
      %c0_54 = arith.constant 0 : index
      %c0_55 = arith.constant 0 : index
      %74 = vector.load %arg20[%c0_54, %c0_55] : memref<1x11xf32, #tpu.memory_space<vmem>>, vector<1x11xf32>
      tpu.vector_store %arg20[%c0_54, %c0_55], %73 {strides = array<i32>} : memref<1x11xf32, #tpu.memory_space<vmem>>, vector<1x11xf32>,
    } else {
    }
    %c0 = arith.constant 0 : index
    %c0_1 = arith.constant 0 : index
    %3 = vector.load %arg19[%c0, %c0_1] : memref<1x11xf32, #tpu.memory_space<vmem>>, vector<1x11xf32>
    %c0_2 = arith.constant 0 : index
    %c0_3 = arith.constant 0 : index
    %4 = vector.load %arg20[%c0_2, %c0_3] : memref<1x11xf32, #tpu.memory_space<vmem>>, vector<1x11xf32>
    %c0_4 = arith.constant 0 : index
    %c0_5 = arith.constant 0 : index
    %5 = vector.load %arg4[%c0_4, %c0_5] : memref<11x256xf32, #tpu.memory_space<vmem>>, vector<11x256xf32>
    %cst = arith.constant dense<0.000000e+00> : vector<1x256xf32>
    %6 = tpu.matmul %3, %5, %cst {dimension_numbers = #tpu.dot_dimension_numbers<[1], [0], [0], [1], [0, 0, 1, 1], [], []>} : vector<1x11xf32>, vector<11x256xf32>, vector<1x256xf32> -> vector<1x256xf32>
    %c0_6 = arith.constant 0 : index
    %c0_7 = arith.constant 0 : index
    %7 = vector.load %arg5[%c0_6, %c0_7] : memref<11x256xf32, #tpu.memory_space<vmem>>, vector<11x256xf32>
    %cst_8 = arith.constant dense<0.000000e+00> : vector<1x256xf32>
    %8 = tpu.matmul %4, %7, %cst_8 {dimension_numbers = #tpu.dot_dimension_numbers<[1], [0], [0], [1], [0, 0, 1, 1], [], []>} : vector<1x11xf32>, vector<11x256xf32>, vector<1x256xf32> -> vector<1x256xf32>
    %9 = arith.addf %6, %8 : vector<1x256xf32>
    %c0_9 = arith.constant 0 : index
    %c0_10 = arith.constant 0 : index
    %10 = vector.load %arg6[%c0_9, %c0_10] : memref<1x256xf32, #tpu.memory_space<vmem>>, vector<1x256xf32>
    %11 = arith.addf %9, %10 : vector<1x256xf32>
    %12 = math.tanh %11 : vector<1x256xf32>
    %13 = arith.index_cast %arg0 : i32 to index
    %c0_11 = arith.constant 0 : index
    %14 = vector.load %arg18[%13, %c0_11] : memref<1x256xf32, #tpu.memory_space<vmem>>, vector<1x256xf32>
    tpu.vector_store %arg18[%13, %c0_11], %12 {strides = array<i32>} : memref<1x256xf32, #tpu.memory_space<vmem>>, vector<1x256xf32>,
    %c0_12 = arith.constant 0 : index
    %c0_13 = arith.constant 0 : index
    %15 = vector.load %arg3[%c0_12, %c0_13] : memref<256x11xf32, #tpu.memory_space<vmem>>, vector<256x11xf32>
    %cst_14 = arith.constant dense<0.000000e+00> : vector<1x11xf32>
    %16 = tpu.matmul %12, %15, %cst_14 {dimension_numbers = #tpu.dot_dimension_numbers<[1], [0], [0], [1], [0, 0, 1, 1], [], []>} : vector<1x256xf32>, vector<256x11xf32>, vector<1x11xf32> -> vector<1x11xf32>
    %c0_15 = arith.constant 0 : index
    %c0_16 = arith.constant 0 : index
    %17 = vector.load %arg7[%c0_15, %c0_16] : memref<11x11xf32, #tpu.memory_space<vmem>>, vector<11x11xf32>
    %cst_17 = arith.constant dense<0.000000e+00> : vector<1x11xf32>
    %18 = tpu.matmul %3, %17, %cst_17 {dimension_numbers = #tpu.dot_dimension_numbers<[1], [0], [0], [1], [0, 0, 1, 1], [], []>} : vector<1x11xf32>, vector<11x11xf32>, vector<1x11xf32> -> vector<1x11xf32>
    %c0_18 = arith.constant 0 : index
    %c0_19 = arith.constant 0 : index
    %19 = vector.load %arg8[%c0_18, %c0_19] : memref<11x11xf32, #tpu.memory_space<vmem>>, vector<11x11xf32>
    %cst_20 = arith.constant dense<0.000000e+00> : vector<1x11xf32>
    %20 = tpu.matmul %16, %19, %cst_20 {dimension_numbers = #tpu.dot_dimension_numbers<[1], [0], [0], [1], [0, 0, 1, 1], [], []>} : vector<1x11xf32>, vector<11x11xf32>, vector<1x11xf32> -> vector<1x11xf32>
    %21 = arith.addf %18, %20 : vector<1x11xf32>
    %c0_21 = arith.constant 0 : index
    %c0_22 = arith.constant 0 : index
    %22 = vector.load %arg9[%c0_21, %c0_22] : memref<1x11xf32, #tpu.memory_space<vmem>>, vector<1x11xf32>
    %23 = arith.addf %21, %22 : vector<1x11xf32>
    %cst_23 = arith.constant 0.000000e+00 : f32
    %24 = vector.broadcast %cst_23 : f32 to vector<1x11xf32>
    %25 = arith.maximumf %23, %24 : vector<1x11xf32>
    %c0_24 = arith.constant 0 : index
    %c0_25 = arith.constant 0 : index
    %26 = vector.load %arg10[%c0_24, %c0_25] : memref<11x33xf32, #tpu.memory_space<vmem>>, vector<11x33xf32>
    %cst_26 = arith.constant dense<0.000000e+00> : vector<1x33xf32>
    %27 = tpu.matmul %25, %26, %cst_26 {dimension_numbers = #tpu.dot_dimension_numbers<[1], [0], [0], [1], [0, 0, 1, 1], [], []>} : vector<1x11xf32>, vector<11x33xf32>, vector<1x33xf32> -> vector<1x33xf32>
    %c0_27 = arith.constant 0 : index
    %c0_28 = arith.constant 0 : index
    %28 = vector.load %arg12[%c0_27, %c0_28] : memref<1x33xf32, #tpu.memory_space<vmem>>, vector<1x33xf32>
    %29 = arith.addf %27, %28 : vector<1x33xf32>
    %c0_29 = arith.constant 0 : index
    %c0_30 = arith.constant 0 : index
    %30 = vector.load %arg11[%c0_29, %c0_30] : memref<11x33xf32, #tpu.memory_space<vmem>>, vector<11x33xf32>
    %cst_31 = arith.constant dense<0.000000e+00> : vector<1x33xf32>
    %31 = tpu.matmul %4, %30, %cst_31 {dimension_numbers = #tpu.dot_dimension_numbers<[1], [0], [0], [1], [0, 0, 1, 1], [], []>} : vector<1x11xf32>, vector<11x33xf32>, vector<1x33xf32> -> vector<1x33xf32>
    %c0_32 = arith.constant 0 : index
    %c0_33 = arith.constant 0 : index
    %32 = vector.load %arg13[%c0_32, %c0_33] : memref<1x33xf32, #tpu.memory_space<vmem>>, vector<1x33xf32>
    %33 = arith.addf %31, %32 : vector<1x33xf32>
    %34 = vector.extract_strided_slice %29 {offsets = [0, 0], sizes = [1, 11], strides = [1, 1]} : vector<1x33xf32> to vector<1x11xf32>
    %35 = vector.extract_strided_slice %33 {offsets = [0, 0], sizes = [1, 11], strides = [1, 1]} : vector<1x33xf32> to vector<1x11xf32>
    %36 = arith.addf %34, %35 : vector<1x11xf32>
    %37 = arith.negf %36 : vector<1x11xf32>
    %38 = math.exp %37 : vector<1x11xf32>
    %cst_34 = arith.constant 1.000000e+00 : f32
    %39 = vector.broadcast %cst_34 : f32 to vector<1x11xf32>
    %40 = arith.addf %39, %38 : vector<1x11xf32>
    %41 = arith.divf %39, %40 : vector<1x11xf32>
    %42 = vector.extract_strided_slice %29 {offsets = [0, 11], sizes = [1, 11], strides = [1, 1]} : vector<1x33xf32> to vector<1x11xf32>
    %43 = vector.extract_strided_slice %33 {offsets = [0, 11], sizes = [1, 11], strides = [1, 1]} : vector<1x33xf32> to vector<1x11xf32>
    %44 = arith.addf %42, %43 : vector<1x11xf32>
    %45 = arith.negf %44 : vector<1x11xf32>
    %46 = math.exp %45 : vector<1x11xf32>
    %cst_35 = arith.constant 1.000000e+00 : f32
    %47 = vector.broadcast %cst_35 : f32 to vector<1x11xf32>
    %48 = arith.addf %47, %46 : vector<1x11xf32>
    %49 = arith.divf %47, %48 : vector<1x11xf32>
    %50 = vector.extract_strided_slice %29 {offsets = [0, 22], sizes = [1, 11], strides = [1, 1]} : vector<1x33xf32> to vector<1x11xf32>
    %51 = vector.extract_strided_slice %33 {offsets = [0, 22], sizes = [1, 11], strides = [1, 1]} : vector<1x33xf32> to vector<1x11xf32>
    %52 = arith.mulf %41, %51 : vector<1x11xf32>
    %53 = arith.addf %50, %52 : vector<1x11xf32>
    %54 = math.tanh %53 : vector<1x11xf32>
    %cst_36 = arith.constant 1.000000e+00 : f32
    %55 = vector.broadcast %cst_36 : f32 to vector<1x11xf32>
    %56 = arith.subf %55, %49 : vector<1x11xf32>
    %57 = arith.mulf %56, %54 : vector<1x11xf32>
    %58 = arith.mulf %49, %4 : vector<1x11xf32>
    %59 = arith.addf %57, %58 : vector<1x11xf32>
    %c0_37 = arith.constant 0 : index
    %c0_38 = arith.constant 0 : index
    %60 = vector.load %arg14[%c0_37, %c0_38] : memref<11x11xf32, #tpu.memory_space<vmem>>, vector<11x11xf32>
    %cst_39 = arith.constant dense<0.000000e+00> : vector<1x11xf32>
    %61 = tpu.matmul %59, %60, %cst_39 {dimension_numbers = #tpu.dot_dimension_numbers<[1], [0], [0], [1], [0, 0, 1, 1], [], []>} : vector<1x11xf32>, vector<11x11xf32>, vector<1x11xf32> -> vector<1x11xf32>
    %c0_40 = arith.constant 0 : index
    %c0_41 = arith.constant 0 : index
    %62 = vector.load %arg15[%c0_40, %c0_41] : memref<1x11xf32, #tpu.memory_space<vmem>>, vector<1x11xf32>
    %63 = arith.addf %61, %62 : vector<1x11xf32>
    %64 = math.tanh %63 : vector<1x11xf32>
    %65 = arith.index_cast %arg0 : i32 to index
    %c0_42 = arith.constant 0 : index
    %66 = vector.load %arg16[%65, %c0_42] : memref<1x11xf32, #tpu.memory_space<vmem>>, vector<1x11xf32>
    tpu.vector_store %arg16[%65, %c0_42], %64 {strides = array<i32>} : memref<1x11xf32, #tpu.memory_space<vmem>>, vector<1x11xf32>,
    %67 = arith.index_cast %arg0 : i32 to index
    %c0_43 = arith.constant 0 : index
    %68 = vector.load %arg17[%67, %c0_43] : memref<1x11xf32, #tpu.memory_space<vmem>>, vector<1x11xf32>
    tpu.vector_store %arg17[%67, %c0_43], %59 {strides = array<i32>} : memref<1x11xf32, #tpu.memory_space<vmem>>, vector<1x11xf32>,
    %c0_44 = arith.constant 0 : index
    %c0_45 = arith.constant 0 : index
    %69 = vector.load %arg20[%c0_44, %c0_45] : memref<1x11xf32, #tpu.memory_space<vmem>>, vector<1x11xf32>
    tpu.vector_store %arg20[%c0_44, %c0_45], %59 {strides = array<i32>} : memref<1x11xf32, #tpu.memory_space<vmem>>, vector<1x11xf32>,
    %c0_46 = arith.constant 0 : index
    %c0_47 = arith.constant 0 : index
    %70 = vector.load %arg19[%c0_46, %c0_47] : memref<1x11xf32, #tpu.memory_space<vmem>>, vector<1x11xf32>
    tpu.vector_store %arg19[%c0_46, %c0_47], %64 {strides = array<i32>} : memref<1x11xf32, #tpu.memory_space<vmem>>, vector<1x11xf32>,
    return
  }
  func.func @transform_0(%arg0: i32) -> (i32, i32) {
    %c0_i32 = arith.constant 0 : i32
    %c0_i32_0 = arith.constant 0 : i32
    %c0_i32_1 = arith.constant 0 : i32
    return %c0_i32, %c0_i32_0 : i32, i32
  }
  func.func @transform_1(%arg0: i32) -> (i32, i32) {
    %c0_i32 = arith.constant 0 : i32
    %c0_i32_0 = arith.constant 0 : i32
    %c0_i32_1 = arith.constant 0 : i32
    return %c0_i32, %c0_i32_0 : i32, i32
  }
  func.func @transform_2(%arg0: i32) -> (i32, i32) {
    %c0_i32 = arith.constant 0 : i32
    %c0_i32_0 = arith.constant 0 : i32
    %c0_i32_1 = arith.constant 0 : i32
    return %c0_i32, %c0_i32_0 : i32, i32
  }
  func.func @transform_3(%arg0: i32) -> (i32, i32) {
    %c0_i32 = arith.constant 0 : i32
    %c0_i32_0 = arith.constant 0 : i32
    %c0_i32_1 = arith.constant 0 : i32
    return %c0_i32, %c0_i32_0 : i32, i32
  }
  func.func @transform_4(%arg0: i32) -> (i32, i32) {
    %c0_i32 = arith.constant 0 : i32
    %c0_i32_0 = arith.constant 0 : i32
    %c0_i32_1 = arith.constant 0 : i32
    return %c0_i32, %c0_i32_0 : i32, i32
  }
  func.func @transform_5(%arg0: i32) -> (i32, i32) {
    %c0_i32 = arith.constant 0 : i32
    %c0_i32_0 = arith.constant 0 : i32
    %c0_i32_1 = arith.constant 0 : i32
    return %c0_i32, %c0_i32_0 : i32, i32
  }
  func.func @transform_6(%arg0: i32) -> (i32, i32) {
    %c0_i32 = arith.constant 0 : i32
    %c0_i32_0 = arith.constant 0 : i32
    %c0_i32_1 = arith.constant 0 : i32
    return %c0_i32, %c0_i32_0 : i32, i32
  }
  func.func @transform_7(%arg0: i32) -> (i32, i32) {
    %c0_i32 = arith.constant 0 : i32
    %c0_i32_0 = arith.constant 0 : i32
    %c0_i32_1 = arith.constant 0 : i32
    return %c0_i32, %c0_i32_0 : i32, i32
  }
  func.func @transform_8(%arg0: i32) -> (i32, i32) {
    %c0_i32 = arith.constant 0 : i32
    %c0_i32_0 = arith.constant 0 : i32
    %c0_i32_1 = arith.constant 0 : i32
    return %c0_i32, %c0_i32_0 : i32, i32
  }
  func.func @transform_9(%arg0: i32) -> (i32, i32) {
    %c0_i32 = arith.constant 0 : i32
    %c0_i32_0 = arith.constant 0 : i32
    %c0_i32_1 = arith.constant 0 : i32
    return %c0_i32, %c0_i32_0 : i32, i32
  }
  func.func @transform_10(%arg0: i32) -> (i32, i32) {
    %c0_i32 = arith.constant 0 : i32
    %c0_i32_0 = arith.constant 0 : i32
    %c0_i32_1 = arith.constant 0 : i32
    return %c0_i32, %c0_i32_0 : i32, i32
  }
  func.func @transform_11(%arg0: i32) -> (i32, i32) {
    %c0_i32 = arith.constant 0 : i32
    %c0_i32_0 = arith.constant 0 : i32
    %c0_i32_1 = arith.constant 0 : i32
    return %c0_i32, %c0_i32_0 : i32, i32
  }
  func.func @transform_12(%arg0: i32) -> (i32, i32) {
    %c0_i32 = arith.constant 0 : i32
    %c0_i32_0 = arith.constant 0 : i32
    %c0_i32_1 = arith.constant 0 : i32
    return %c0_i32, %c0_i32_0 : i32, i32
  }
  func.func @transform_13(%arg0: i32) -> (i32, i32) {
    %c0_i32 = arith.constant 0 : i32
    %c0_i32_0 = arith.constant 0 : i32
    %c0_i32_1 = arith.constant 0 : i32
    return %c0_i32, %c0_i32_0 : i32, i32
  }
  func.func @transform_14(%arg0: i32) -> (i32, i32) {
    %c0_i32 = arith.constant 0 : i32
    %c0_i32_0 = arith.constant 0 : i32
    %c0_i32_1 = arith.constant 0 : i32
    return %c0_i32, %c0_i32_0 : i32, i32
  }
  func.func @transform_15(%arg0: i32) -> (i32, i32) {
    %c0_i32 = arith.constant 0 : i32
    %c0_i32_0 = arith.constant 0 : i32
    %c0_i32_1 = arith.constant 0 : i32
    return %c0_i32, %c0_i32_0 : i32, i32
  }
  func.func @transform_16(%arg0: i32) -> (i32, i32) {
    %c0_i32 = arith.constant 0 : i32
    %c0_i32_0 = arith.constant 0 : i32
    %c0_i32_1 = arith.constant 0 : i32
    return %c0_i32, %c0_i32_0 : i32, i32
  }
  func.func @transform_17(%arg0: i32) -> (i32, i32) {
    %c0_i32 = arith.constant 0 : i32
    %c0_i32_0 = arith.constant 0 : i32
    %c0_i32_1 = arith.constant 0 : i32
    return %c0_i32, %c0_i32_0 : i32, i32
  }
}

</mosaic_0001>

<llo_original>
// kernel: attn_decoder_decode.1
$region0: #{attn_decoder_decode.1}
  #allocation0 [shape = 'u32[]', space=smem, size = 0x4, offset = 0x4, fixed_abs, tag = 'smem constant byte address 0x4 - core index']
  #allocation1 [shape = 'u32[72,128]{1,0:T(1,128)}', space=vmem, size = 0x9000, scoped, tag = 'internal scratch']
  #allocation2 [shape = 'f32[1,11]{1,0:T(1,128)}', space=vmem, size = 0x200, scoped, tag = 'scratch operand']
  #allocation3 [shape = 'f32[1,11]{1,0:T(1,128)}', space=vmem, size = 0x200, scoped, tag = 'scratch operand']
  %s0 = inlined_call_operand.vmem [shape: f32[1,11], index: 0, kind: input, shape index: {}]
  %s1 = inlined_call_operand.vmem [shape: f32[1,11], index: 1, kind: input, shape index: {}]
  %s2 = inlined_call_operand.vmem [shape: f32[256,11], index: 2, kind: input, shape index: {}]
  %s3 = inlined_call_operand.vmem [shape: f32[11,256], index: 3, kind: input, shape index: {}]
  %s4 = inlined_call_operand.vmem [shape: f32[11,256], index: 4, kind: input, shape index: {}]
  %s5 = inlined_call_operand.vmem [shape: f32[1,256], index: 5, kind: input, shape index: {}]
  %s6 = inlined_call_operand.vmem [shape: f32[11,11], index: 6, kind: input, shape index: {}]
  %s7 = inlined_call_operand.vmem [shape: f32[11,11], index: 7, kind: input, shape index: {}]
  %s8 = inlined_call_operand.vmem [shape: f32[1,11], index: 8, kind: input, shape index: {}]
  %s9 = inlined_call_operand.vmem [shape: f32[11,33], index: 9, kind: input, shape index: {}]
  %s10 = inlined_call_operand.vmem [shape: f32[11,33], index: 10, kind: input, shape index: {}]
  %s11 = inlined_call_operand.vmem [shape: f32[1,33], index: 11, kind: input, shape index: {}]
  %s12 = inlined_call_operand.vmem [shape: f32[1,33], index: 12, kind: input, shape index: {}]
  %s13 = inlined_call_operand.vmem [shape: f32[11,11], index: 13, kind: input, shape index: {}]
  %s14 = inlined_call_operand.vmem [shape: f32[1,11], index: 14, kind: input, shape index: {}]
  %s15 = inlined_call_operand.hbm [shape: f32[1,11], index: 15, kind: output, shape index: {0}]
  %s16 = inlined_call_operand.hbm [shape: f32[1,11], index: 16, kind: output, shape index: {1}]
  %s17 = inlined_call_operand.hbm [shape: f32[1,256], index: 17, kind: output, shape index: {2}]
  %18 = xla_tuple %s15, %s16, %s17
  %s19 = sld [smem:[#allocation0]]
  $region90: #{attn_decoder_decode.1} parent=0
    _
  %s21 = ssub.s32 1, %s19
  %s22 = scalar_select 0, %s21, %s19
  $region1: #{attn_decoder_decode.1} parent=0
    #allocation4 [shape = 'u8[512]{0}', space=vmem, size = 0x400, scoped, tag = 'output window, operand 0, single buffered']
    #allocation5 [shape = 's32[1]{0}', space=sflag, size = 0x4, scoped, tag = 'scoped memory for attn_decoder_decode.1']
    #allocation6 [shape = 'u8[512]{0}', space=vmem, size = 0x400, scoped, tag = 'output window, operand 1, single buffered']
    #allocation7 [shape = 's32[1]{0}', space=sflag, size = 0x4, scoped, tag = 'scoped memory for attn_decoder_decode.1']
    #allocation8 [shape = 'u8[1024]{0}', space=vmem, size = 0x400, scoped, tag = 'output window, operand 2, single buffered']
    %23 = vsyncpa [#allocation5], 0
    %24 = vsyncpa [#allocation7], 0
    // Predicated region
    $region2: #{attn_decoder_decode.1} parent=1 // pred_check
      _
    $region3: #{attn_decoder_decode.1} parent=1 // pred_check_branch
      %26 = sbr.rel (0) target = $region5
    $region4: #{attn_decoder_decode.1} parent=1 // pred_region
      _
    $region5: #{attn_decoder_decode.1} parent=1 // pred_fallthru
      _
    // Predicated region
    $region6: #{attn_decoder_decode.1} parent=1 // pred_check
      _
    $region7: #{attn_decoder_decode.1} parent=1 // pred_check_branch
      %28 = sbr.rel (0) target = $region9
    $region8: #{attn_decoder_decode.1} parent=1 // pred_region
      _
    $region9: #{attn_decoder_decode.1} parent=1 // pred_fallthru
      _
    // Predicated region
    $region10: #{attn_decoder_decode.1} parent=1 // pred_check
      _
    $region11: #{attn_decoder_decode.1} parent=1 // pred_check_branch
      %30 = sbr.rel (0) target = $region13
    $region12: #{attn_decoder_decode.1} parent=1 // pred_region
      _
    $region13: #{attn_decoder_decode.1} parent=1 // pred_fallthru
      _
    // Predicated region
    $region14: #{attn_decoder_decode.1} parent=1 // pred_check
      _
    $region15: #{attn_decoder_decode.1} parent=1 // pred_check_branch
      %32 = sbr.rel (0) target = $region17
    $region16: #{attn_decoder_decode.1} parent=1 // pred_region
      _
    $region17: #{attn_decoder_decode.1} parent=1 // pred_fallthru
      _
    // Predicated region
    $region18: #{attn_decoder_decode.1} parent=1 // pred_check
      _
    $region19: #{attn_decoder_decode.1} parent=1 // pred_check_branch
      %34 = sbr.rel (0) target = $region21
    $region20: #{attn_decoder_decode.1} parent=1 // pred_region
      _
    $region21: #{attn_decoder_decode.1} parent=1 // pred_fallthru
      _
    // Predicated region
    $region22: #{attn_decoder_decode.1} parent=1 // pred_check
      _
    $region23: #{attn_decoder_decode.1} parent=1 // pred_check_branch
      %36 = sbr.rel (0) target = $region25
    $region24: #{attn_decoder_decode.1} parent=1 // pred_region
      _
    $region25: #{attn_decoder_decode.1} parent=1 // pred_fallthru
      _
    // Predicated region
    $region26: #{attn_decoder_decode.1} parent=1 // pred_check
      _
    $region27: #{attn_decoder_decode.1} parent=1 // pred_check_branch
      %38 = sbr.rel (0) target = $region29
    $region28: #{attn_decoder_decode.1} parent=1 // pred_region
      _
    $region29: #{attn_decoder_decode.1} parent=1 // pred_fallthru
      _
    // Predicated region
    $region30: #{attn_decoder_decode.1} parent=1 // pred_check
      _
    $region31: #{attn_decoder_decode.1} parent=1 // pred_check_branch
      %40 = sbr.rel (0) target = $region33
    $region32: #{attn_decoder_decode.1} parent=1 // pred_region
      _
    $region33: #{attn_decoder_decode.1} parent=1 // pred_fallthru
      _
    // Predicated region
    $region34: #{attn_decoder_decode.1} parent=1 // pred_check
      _
    $region35: #{attn_decoder_decode.1} parent=1 // pred_check_branch
      %42 = sbr.rel (0) target = $region37
    $region36: #{attn_decoder_decode.1} parent=1 // pred_region
      _
    $region37: #{attn_decoder_decode.1} parent=1 // pred_fallthru
      _
    // Predicated region
    $region38: #{attn_decoder_decode.1} parent=1 // pred_check
      _
    $region39: #{attn_decoder_decode.1} parent=1 // pred_check_branch
      %44 = sbr.rel (0) target = $region41
    $region40: #{attn_decoder_decode.1} parent=1 // pred_region
      _
    $region41: #{attn_decoder_decode.1} parent=1 // pred_fallthru
      _
    // Predicated region
    $region42: #{attn_decoder_decode.1} parent=1 // pred_check
      _
    $region43: #{attn_decoder_decode.1} parent=1 // pred_check_branch
      %46 = sbr.rel (0) target = $region45
    $region44: #{attn_decoder_decode.1} parent=1 // pred_region
      _
    $region45: #{attn_decoder_decode.1} parent=1 // pred_fallthru
      _
    // Predicated region
    $region46: #{attn_decoder_decode.1} parent=1 // pred_check
      _
    $region47: #{attn_decoder_decode.1} parent=1 // pred_check_branch
      %48 = sbr.rel (0) target = $region49
    $region48: #{attn_decoder_decode.1} parent=1 // pred_region
      _
    $region49: #{attn_decoder_decode.1} parent=1 // pred_fallthru
      _
    // Predicated region
    $region50: #{attn_decoder_decode.1} parent=1 // pred_check
      _
    $region51: #{attn_decoder_decode.1} parent=1 // pred_check_branch
      %50 = sbr.rel (0) target = $region53
    $region52: #{attn_decoder_decode.1} parent=1 // pred_region
      _
    $region53: #{attn_decoder_decode.1} parent=1 // pred_fallthru
      _
    // Predicated region
    $region54: #{attn_decoder_decode.1} parent=1 // pred_check
      _
    $region55: #{attn_decoder_decode.1} parent=1 // pred_check_branch
      %52 = sbr.rel (0) target = $region57
    $region56: #{attn_decoder_decode.1} parent=1 // pred_region
      _
    $region57: #{attn_decoder_decode.1} parent=1 // pred_fallthru
      _
    // Predicated region
    $region58: #{attn_decoder_decode.1} parent=1 // pred_check
      _
    $region59: #{attn_decoder_decode.1} parent=1 // pred_check_branch
      %54 = sbr.rel (0) target = $region61
    $region60: #{attn_decoder_decode.1} parent=1 // pred_region
      _
    $region61: #{attn_decoder_decode.1} parent=1 // pred_fallthru
      _
    %p55 = scmp.eq.s32.totalorder 0, 0
    // Predicated region
    $region62: #{attn_decoder_decode.1} parent=1 // pred_check
      %p56 = pneg %p55
    $region63: #{attn_decoder_decode.1} parent=1 // pred_check_branch
      %58 = sbr.rel (%p56) target = $region65
    $region64: #{attn_decoder_decode.1} parent=1 // pred_region
      %v59 = vld [vmem:[%s0] sm:$0x1]
      %vm60 = vcmask 81920
      %61 = vst.msk [vmem:[#allocation2] sm:$0x1] %vm60, %v59
      %v62 = vld [vmem:[%s1] sm:$0x1]
      %63 = vst.msk [vmem:[#allocation3] sm:$0x1] %vm60, %v62
    $region65: #{attn_decoder_decode.1} parent=1 // pred_fallthru
      _
    %v64 = vld [vmem:[#allocation2] sm:$0x1]
    %v65 = vld [vmem:[#allocation3] sm:$0x1]
    %v66 = vld [vmem:[%s3] sm:$0xff]
    %v67 = vld [vmem:[%s3 + $0x8] sm:$0xff]
    %v68 = vld [vmem:[%s3 + $0x10] sm:$0x7]
    %v69 = vld [vmem:[%s3 + $0x18] sm:$0x7]
    %v70 = vld [vmem:[%s4] sm:$0xff]
    %v71 = vld [vmem:[%s4 + $0x8] sm:$0xff]
    %v72 = vld [vmem:[%s4 + $0x10] sm:$0x7]
    %v73 = vld [vmem:[%s4 + $0x18] sm:$0x7]
    %vm74 = vcmask 89088
    %v76 = vsel %vm74, %v65, 0
    %vm78 = vcmask 1042432
    %v80 = vsel %vm78, %v72, 0
    %v83 = vsel %vm78, %v73, 0
    %85 = vmatpush.msra.mxu0 0.0
    %86 = vmatpush.msra.mxu0 0.0
    %87 = vmatpush.msra.mxu0 0.0
    %88 = vmatpush.msra.mxu0 0.0
    %89 = vmatpush.msra.mxu0 0.0
    %90 = vmatpush.msra.mxu0 0.0
    %91 = vmatpush.msra.mxu0 0.0
    %92 = vmatpush.msra.mxu0 0.0
    %93 = vmatpush.msra.mxu0 0.0
    %94 = vmatpush.msra.mxu0 0.0
    %95 = vmatpush.msra.mxu0 0.0
    %96 = vmatpush.msra.mxu0 0.0
    %97 = vmatpush.msra.mxu0 0.0
    %98 = vmatpush.msra.mxu0 0.0
    %99 = vmatpush.msra.mxu0 %v80
    %100 = vmatpush.msra.mxu0 %v70
    %101 = vmatmul.f32.gmra.mxu0 %v76
    %v102 = vpop.f32.mrf.mxu0
    %v103 = vadd.f32 0.0, %v102
    %104 = vdwg.mxu0
    %105 = vmatpush.msra.mxu0 0.0
    %106 = vmatpush.msra.mxu0 0.0
    %107 = vmatpush.msra.mxu0 0.0
    %108 = vmatpush.msra.mxu0 0.0
    %109 = vmatpush.msra.mxu0 0.0
    %110 = vmatpush.msra.mxu0 0.0
    %111 = vmatpush.msra.mxu0 0.0
    %112 = vmatpush.msra.mxu0 0.0
    %113 = vmatpush.msra.mxu0 0.0
    %114 = vmatpush.msra.mxu0 0.0
    %115 = vmatpush.msra.mxu0 0.0
    %116 = vmatpush.msra.mxu0 0.0
    %117 = vmatpush.msra.mxu0 0.0
    %118 = vmatpush.msra.mxu0 0.0
    %119 = vmatpush.msra.mxu0 %v83
    %120 = vmatpush.msra.mxu0 %v71
    %121 = vmatmul.f32.gmra.mxu0 %v76
    %v122 = vpop.f32.mrf.mxu0
    %v123 = vadd.f32 0.0, %v122
    %124 = vdwg.mxu0
    %v126 = vsel %vm74, %v64, 0
    %v129 = vsel %vm78, %v68, 0
    %v132 = vsel %vm78, %v69, 0
    %134 = vmatpush.msra.mxu0 0.0
    %135 = vmatpush.msra.mxu0 0.0
    %136 = vmatpush.msra.mxu0 0.0
    %137 = vmatpush.msra.mxu0 0.0
    %138 = vmatpush.msra.mxu0 0.0
    %139 = vmatpush.msra.mxu0 0.0
    %140 = vmatpush.msra.mxu0 0.0
    %141 = vmatpush.msra.mxu0 0.0
    %142 = vmatpush.msra.mxu0 0.0
    %143 = vmatpush.msra.mxu0 0.0
    %144 = vmatpush.msra.mxu0 0.0
    %145 = vmatpush.msra.mxu0 0.0
    %146 = vmatpush.msra.mxu0 0.0
    %147 = vmatpush.msra.mxu0 0.0
    %148 = vmatpush.msra.mxu0 %v129
    %149 = vmatpush.msra.mxu0 %v66
    %150 = vmatmul.f32.gmra.mxu0 %v126
    %v151 = vpop.f32.mrf.mxu0
    %v152 = vadd.f32 %v103, %v151
    %153 = vdwg.mxu0
    %154 = vmatpush.msra.mxu0 0.0
    %155 = vmatpush.msra.mxu0 0.0
    %156 = vmatpush.msra.mxu0 0.0
    %157 = vmatpush.msra.mxu0 0.0
    %158 = vmatpush.msra.mxu0 0.0
    %159 = vmatpush.msra.mxu0 0.0
    %160 = vmatpush.msra.mxu0 0.0
    %161 = vmatpush.msra.mxu0 0.0
    %162 = vmatpush.msra.mxu0 0.0
    %163 = vmatpush.msra.mxu0 0.0
    %164 = vmatpush.msra.mxu0 0.0
    %165 = vmatpush.msra.mxu0 0.0
    %166 = vmatpush.msra.mxu0 0.0
    %167 = vmatpush.msra.mxu0 0.0
    %168 = vmatpush.msra.mxu0 %v132
    %169 = vmatpush.msra.mxu0 %v67
    %170 = vmatmul.f32.gmra.mxu0 %v126
    %v171 = vpop.f32.mrf.mxu0
    %v172 = vadd.f32 %v123, %v171
    %173 = vdwg.mxu0
    %v174 = vld [vmem:[%s5] sm:$0x3]
    %v176 = vperm.slane %v174, 0
    %v177 = vperm.slane %v174, 1
    %v180 = vadd.f32 %v152, %v176
    %v181 = vadd.f32 %v172, %v177
    %v182 = vtanh.pop %v180
    %v183 = vtanh.pop %v181
    %v186 = vrot.slane %v183, 7
    %vm187 = vcmask 1040384
    %v188 = vsel %vm187, %v182, %v186
    %s190 = smul.u32 0, 2
    %s191 = scalar_lea.vmem [#allocation8], %s190
    %v192 = vlaneseq
    %vm193 = vcmp.ge.s32.totalorder %v192, 0
    %vm194 = vcmp.lt.s32.totalorder %v192, 256
    %vm195 = vmand %vm193, %vm194
    %196 = vst.msk [vmem:[%s191] sm:$0x3] %vm195, %v188
    %v197 = vld [vmem:[%s2] sm:$0xff]
    %v198 = vld [vmem:[%s2 + $0x8] sm:$0xff]
    %v199 = vld [vmem:[%s2 + $0x10] sm:$0xff]
    %v200 = vld [vmem:[%s2 + $0x18] sm:$0xff]
    %v201 = vld [vmem:[%s2 + $0x20] sm:$0xff]
    %v202 = vld [vmem:[%s2 + $0x28] sm:$0xff]
    %v203 = vld [vmem:[%s2 + $0x30] sm:$0xff]
    %v204 = vld [vmem:[%s2 + $0x38] sm:$0xff]
    %v205 = vld [vmem:[%s2 + $0x40] sm:$0xff]
    %v206 = vld [vmem:[%s2 + $0x48] sm:$0xff]
    %v207 = vld [vmem:[%s2 + $0x50] sm:$0xff]
    %v208 = vld [vmem:[%s2 + $0x58] sm:$0xff]
    %v209 = vld [vmem:[%s2 + $0x60] sm:$0xff]
    %v210 = vld [vmem:[%s2 + $0x68] sm:$0xff]
    %v211 = vld [vmem:[%s2 + $0x70] sm:$0xff]
    %v212 = vld [vmem:[%s2 + $0x78] sm:$0xff]
    %v213 = vld [vmem:[%s2 + $0x80] sm:$0xff]
    %v214 = vld [vmem:[%s2 + $0x88] sm:$0xff]
    %v215 = vld [vmem:[%s2 + $0x90] sm:$0xff]
    %v216 = vld [vmem:[%s2 + $0x98] sm:$0xff]
    %v217 = vld [vmem:[%s2 + $0xa0] sm:$0xff]
    %v218 = vld [vmem:[%s2 + $0xa8] sm:$0xff]
    %v219 = vld [vmem:[%s2 + $0xb0] sm:$0xff]
    %v220 = vld [vmem:[%s2 + $0xb8] sm:$0xff]
    %v221 = vld [vmem:[%s2 + $0xc0] sm:$0xff]
    %v222 = vld [vmem:[%s2 + $0xc8] sm:$0xff]
    %v223 = vld [vmem:[%s2 + $0xd0] sm:$0xff]
    %v224 = vld [vmem:[%s2 + $0xd8] sm:$0xff]
    %v225 = vld [vmem:[%s2 + $0xe0] sm:$0xff]
    %v226 = vld [vmem:[%s2 + $0xe8] sm:$0xff]
    %v227 = vld [vmem:[%s2 + $0xf0] sm:$0xff]
    %v228 = vld [vmem:[%s2 + $0xf8] sm:$0xff]
    %229 = vmatpush.msra.mxu0 %v212
    %230 = vmatpush.msra.mxu0 %v211
    %231 = vmatpush.msra.mxu0 %v210
    %232 = vmatpush.msra.mxu0 %v209
    %233 = vmatpush.msra.mxu0 %v208
    %234 = vmatpush.msra.mxu0 %v207
    %235 = vmatpush.msra.mxu0 %v206
    %236 = vmatpush.msra.mxu0 %v205
    %237 = vmatpush.msra.mxu0 %v204
    %238 = vmatpush.msra.mxu0 %v203
    %239 = vmatpush.msra.mxu0 %v202
    %240 = vmatpush.msra.mxu0 %v201
    %241 = vmatpush.msra.mxu0 %v200
    %242 = vmatpush.msra.mxu0 %v199
    %243 = vmatpush.msra.mxu0 %v198
    %244 = vmatpush.msra.mxu0 %v197
    %245 = vmatmul.f32.gmra.mxu0 %v182
    %v246 = vpop.f32.mrf.mxu0
    %v247 = vadd.f32 0.0, %v246
    %248 = vdwg.mxu0
    %249 = vmatpush.msra.mxu0 %v228
    %250 = vmatpush.msra.mxu0 %v227
    %251 = vmatpush.msra.mxu0 %v226
    %252 = vmatpush.msra.mxu0 %v225
    %253 = vmatpush.msra.mxu0 %v224
    %254 = vmatpush.msra.mxu0 %v223
    %255 = vmatpush.msra.mxu0 %v222
    %256 = vmatpush.msra.mxu0 %v221
    %257 = vmatpush.msra.mxu0 %v220
    %258 = vmatpush.msra.mxu0 %v219
    %259 = vmatpush.msra.mxu0 %v218
    %260 = vmatpush.msra.mxu0 %v217
    %261 = vmatpush.msra.mxu0 %v216
    %262 = vmatpush.msra.mxu0 %v215
    %263 = vmatpush.msra.mxu0 %v214
    %264 = vmatpush.msra.mxu0 %v213
    %265 = vmatmul.f32.gmra.mxu0 %v183
    %v266 = vpop.f32.mrf.mxu0
    %v267 = vadd.f32 %v247, %v266
    %268 = vdwg.mxu0
    %v269 = vld [vmem:[%s6] sm:$0xff]
    %v270 = vld [vmem:[%s6 + $0x8] sm:$0x7]
    %v271 = vld [vmem:[%s7] sm:$0xff]
    %v272 = vld [vmem:[%s7 + $0x8] sm:$0x7]
    %v274 = vsel %vm74, %v267, 0
    %v277 = vsel %vm78, %v272, 0
    %279 = vmatpush.msra.mxu0 0.0
    %280 = vmatpush.msra.mxu0 0.0
    %281 = vmatpush.msra.mxu0 0.0
    %282 = vmatpush.msra.mxu0 0.0
    %283 = vmatpush.msra.mxu0 0.0
    %284 = vmatpush.msra.mxu0 0.0
    %285 = vmatpush.msra.mxu0 0.0
    %286 = vmatpush.msra.mxu0 0.0
    %287 = vmatpush.msra.mxu0 0.0
    %288 = vmatpush.msra.mxu0 0.0
    %289 = vmatpush.msra.mxu0 0.0
    %290 = vmatpush.msra.mxu0 0.0
    %291 = vmatpush.msra.mxu0 0.0
    %292 = vmatpush.msra.mxu0 0.0
    %293 = vmatpush.msra.mxu0 %v277
    %294 = vmatpush.msra.mxu0 %v271
    %295 = vmatmul.f32.gmra.mxu0 %v274
    %v296 = vpop.f32.mrf.mxu0
    %v297 = vadd.f32 0.0, %v296
    %298 = vdwg.mxu0
    %v300 = vsel %vm78, %v270, 0
    %302 = vmatpush.msra.mxu0 0.0
    %303 = vmatpush.msra.mxu0 0.0
    %304 = vmatpush.msra.mxu0 0.0
    %305 = vmatpush.msra.mxu0 0.0
    %306 = vmatpush.msra.mxu0 0.0
    %307 = vmatpush.msra.mxu0 0.0
    %308 = vmatpush.msra.mxu0 0.0
    %309 = vmatpush.msra.mxu0 0.0
    %310 = vmatpush.msra.mxu0 0.0
    %311 = vmatpush.msra.mxu0 0.0
    %312 = vmatpush.msra.mxu0 0.0
    %313 = vmatpush.msra.mxu0 0.0
    %314 = vmatpush.msra.mxu0 0.0
    %315 = vmatpush.msra.mxu0 0.0
    %316 = vmatpush.msra.mxu0 %v300
    %317 = vmatpush.msra.mxu0 %v269
    %318 = vmatmul.f32.gmra.mxu0 %v126
    %v319 = vpop.f32.mrf.mxu0
    %v320 = vadd.f32 %v297, %v319
    %321 = vdwg.mxu0
    %v322 = vld [vmem:[%s8] sm:$0x1]
    %v323 = vadd.f32 %v320, %v322
    %v324 = vmax.f32 %v323, 0.0
    %v325 = vld [vmem:[%s9] sm:$0xff]
    %v326 = vld [vmem:[%s9 + $0x8] sm:$0x7]
    %v327 = vld [vmem:[%s11] sm:$0x1]
    %v329 = vsel %vm74, %v324, 0
    %v332 = vsel %vm78, %v326, 0
    %334 = vmatpush.msra.mxu0 0.0
    %335 = vmatpush.msra.mxu0 0.0
    %336 = vmatpush.msra.mxu0 0.0
    %337 = vmatpush.msra.mxu0 0.0
    %338 = vmatpush.msra.mxu0 0.0
    %339 = vmatpush.msra.mxu0 0.0
    %340 = vmatpush.msra.mxu0 0.0
    %341 = vmatpush.msra.mxu0 0.0
    %342 = vmatpush.msra.mxu0 0.0
    %343 = vmatpush.msra.mxu0 0.0
    %344 = vmatpush.msra.mxu0 0.0
    %345 = vmatpush.msra.mxu0 0.0
    %346 = vmatpush.msra.mxu0 0.0
    %347 = vmatpush.msra.mxu0 0.0
    %348 = vmatpush.msra.mxu0 %v332
    %349 = vmatpush.msra.mxu0 %v325
    %350 = vmatmul.f32.gmra.mxu0 %v329
    %v351 = vpop.f32.mrf.mxu0
    %v352 = vadd.f32 %v327, %v351
    %353 = vdwg.mxu0
    %v354 = vld [vmem:[%s10] sm:$0xff]
    %v355 = vld [vmem:[%s10 + $0x8] sm:$0x7]
    %v356 = vld [vmem:[%s12] sm:$0x1]
    %v358 = vsel %vm78, %v355, 0
    %360 = vmatpush.msra.mxu0 0.0
    %361 = vmatpush.msra.mxu0 0.0
    %362 = vmatpush.msra.mxu0 0.0
    %363 = vmatpush.msra.mxu0 0.0
    %364 = vmatpush.msra.mxu0 0.0
    %365 = vmatpush.msra.mxu0 0.0
    %366 = vmatpush.msra.mxu0 0.0
    %367 = vmatpush.msra.mxu0 0.0
    %368 = vmatpush.msra.mxu0 0.0
    %369 = vmatpush.msra.mxu0 0.0
    %370 = vmatpush.msra.mxu0 0.0
    %371 = vmatpush.msra.mxu0 0.0
    %372 = vmatpush.msra.mxu0 0.0
    %373 = vmatpush.msra.mxu0 0.0
    %374 = vmatpush.msra.mxu0 %v358
    %375 = vmatpush.msra.mxu0 %v354
    %376 = vmatmul.f32.gmra.mxu0 %v76
    %v377 = vpop.f32.mrf.mxu0
    %v378 = vadd.f32 %v356, %v377
    %379 = vdwg.mxu0
    %v380 = vadd.f32 %v352, %v378
    %v381 = vxor.u32 %v380, 2147483648
    %v382 = vmul.f32 %v381, 1.442695
    %v383 = vpow.pop %v382
    %v384 = vadd.f32 %v383, 1.0
    %v385 = vrcp.pop %v384
    %v386 = vmul.f32 %v384, %v385
    %v387 = vsub.f32 1.0, %v386
    %v388 = vmul.f32 %v385, %v387
    %v389 = vadd.f32 %v385, %v388
    %vm390 = vweird.f32 %v384
    %vm391 = vweird.f32 %v385
    %vm392 = vmor %vm390, %vm391
    %v393 = vsel %vm392, %v385, %v389
    %v394 = vand.u32 2147483647, %v384
    %vm395 = vcmp.eq.f32.partialorder %v394, 8.507059e+37
    %v396 = vand.u32 %v384, 2147483648
    %v397 = vor.u32 1.1754944e-38, %v396
    %v398 = vsel %vm395, %v397, %v393
    %v399 = vmul.f32 1.0, %v398
    %401 = vrot.lane.b32.xlu0 %v378, 106
    %v402 = vpop.permute.xlu0 %401
    %v404 = vmul.f32 %v399, %v402
    %406 = vrot.lane.b32.xlu0 %v404, 22
    %v407 = vpop.permute.xlu0 %406
    %v409 = vadd.f32 %v352, %v407
    %v410 = vtanh.pop %v409
    %v411 = vsub.f32 1.0, %v399
    %413 = vrot.lane.b32.xlu0 %v410, 117
    %v414 = vpop.permute.xlu0 %413
    %v416 = vmul.f32 %v411, %v414
    %v417 = vperm.slane %v65, 0
    %418 = vrot.lane.b32.xlu0 %v417, 11
    %v419 = vpop.permute.xlu0 %418
    %v421 = vmul.f32 %v399, %v419
    %v422 = vadd.f32 %v416, %v421
    %v423 = vld [vmem:[%s13] sm:$0xff]
    %v424 = vld [vmem:[%s13 + $0x8] sm:$0x7]
    %v425 = vld [vmem:[%s14] sm:$0x1]
    %427 = vrot.lane.b32.xlu0 %v422, 117
    %v428 = vpop.permute.xlu0 %427
    %v429 = vsel %vm74, %v428, 0
    %v432 = vsel %vm78, %v424, 0
    %434 = vmatpush.msra.mxu0 0.0
    %435 = vmatpush.msra.mxu0 0.0
    %436 = vmatpush.msra.mxu0 0.0
    %437 = vmatpush.msra.mxu0 0.0
    %438 = vmatpush.msra.mxu0 0.0
    %439 = vmatpush.msra.mxu0 0.0
    %440 = vmatpush.msra.mxu0 0.0
    %441 = vmatpush.msra.mxu0 0.0
    %442 = vmatpush.msra.mxu0 0.0
    %443 = vmatpush.msra.mxu0 0.0
    %444 = vmatpush.msra.mxu0 0.0
    %445 = vmatpush.msra.mxu0 0.0
    %446 = vmatpush.msra.mxu0 0.0
    %447 = vmatpush.msra.mxu0 0.0
    %448 = vmatpush.msra.mxu0 %v432
    %449 = vmatpush.msra.mxu0 %v423
    %450 = vmatmul.f32.gmra.mxu0 %v429
    %v451 = vpop.f32.mrf.mxu0
    %v452 = vadd.f32 %v425, %v451
    %453 = vdwg.mxu0
    %v454 = vtanh.pop %v452
    %vm455 = vcmask 81920
    %456 = vst.msk [vmem:[#allocation4] sm:$0x1] %vm455, %v454
    %458 = vst.msk [vmem:[#allocation6] sm:$0x1] %vm455, %v428
    %459 = vst.msk [vmem:[#allocation3] sm:$0x1] %vm455, %v428
    %460 = vst.msk [vmem:[#allocation2] sm:$0x1] %vm455, %v454
    // Predicated region
    $region66: #{attn_decoder_decode.1} parent=1 // pred_check
      _
    $region67: #{attn_decoder_decode.1} parent=1 // pred_check_branch
      %462 = sbr.rel (0) target = $region69
    $region68: #{attn_decoder_decode.1} parent=1 // pred_region
      %464 = vsyncadd [#allocation5], 0
      %s466 = sshll.u32 [#allocation4], 4
      %s467 = int_to_ptr.vmem [resolvable:$true] %s466
      %s468 = sshll.u32 %s15, 4
      %s469 = int_to_ptr.hbm [resolvable:$true] %s468
      %471 = dma.vmem_to_hbm [thread:$0]  %s467, 16, %s469, [#allocation5]
    $region69: #{attn_decoder_decode.1} parent=1 // pred_fallthru
      _
    // Predicated region
    $region70: #{attn_decoder_decode.1} parent=1 // pred_check
      _
    $region71: #{attn_decoder_decode.1} parent=1 // pred_check_branch
      %473 = sbr.rel (0) target = $region73
    $region72: #{attn_decoder_decode.1} parent=1 // pred_region
      %475 = vsyncadd [#allocation7], 0
      %s477 = sshll.u32 [#allocation6], 4
      %s478 = int_to_ptr.vmem [resolvable:$true] %s477
      %s479 = sshll.u32 %s16, 4
      %s480 = int_to_ptr.hbm [resolvable:$true] %s479
      %482 = dma.vmem_to_hbm [thread:$0]  %s478, 16, %s480, [#allocation7]
    $region73: #{attn_decoder_decode.1} parent=1 // pred_fallthru
      _
    // Predicated region
    $region74: #{attn_decoder_decode.1} parent=1 // pred_check
      _
    $region75: #{attn_decoder_decode.1} parent=1 // pred_check_branch
      %484 = sbr.rel (0) target = $region77
    $region76: #{attn_decoder_decode.1} parent=1 // pred_region
      %486 = vsyncadd [#allocation7], 0
      %s488 = sshll.u32 [#allocation8], 4
      %s489 = int_to_ptr.vmem [resolvable:$true] %s488
      %s490 = sshll.u32 %s17, 4
      %s491 = int_to_ptr.hbm [resolvable:$true] %s490
      %493 = dma.vmem_to_hbm [thread:$0]  %s489, 32, %s491, [#allocation7]
    $region77: #{attn_decoder_decode.1} parent=1 // pred_fallthru
      _
    // Predicated region
    $region78: #{attn_decoder_decode.1} parent=1 // pred_check
      _
    $region79: #{attn_decoder_decode.1} parent=1 // pred_check_branch
      %495 = sbr.rel (0) target = $region81
    $region80: #{attn_decoder_decode.1} parent=1 // pred_region
      %497 = dma.done [#allocation5], 16
    $region81: #{attn_decoder_decode.1} parent=1 // pred_fallthru
      _
    // Predicated region
    $region82: #{attn_decoder_decode.1} parent=1 // pred_check
      _
    $region83: #{attn_decoder_decode.1} parent=1 // pred_check_branch
      %499 = sbr.rel (0) target = $region85
    $region84: #{attn_decoder_decode.1} parent=1 // pred_region
      %501 = dma.done [#allocation7], 16
    $region85: #{attn_decoder_decode.1} parent=1 // pred_fallthru
      _
    // Predicated region
    $region86: #{attn_decoder_decode.1} parent=1 // pred_check
      _
    $region87: #{attn_decoder_decode.1} parent=1 // pred_check_branch
      %503 = sbr.rel (0) target = $region89
    $region88: #{attn_decoder_decode.1} parent=1 // pred_region
      %505 = dma.done [#allocation7], 32
    $region89: #{attn_decoder_decode.1} parent=1 // pred_fallthru
      _
    %506 = vsyncpa [#allocation5], 1
    %507 = vsyncpa [#allocation7], 1

</llo_original>
